<compile_context>
chip_gen: v7x
topology: tpu7x:2x2x1
jax: 0.10.0
libtpu: 0.0.40
codegen_flags: <defaults>
</compile_context>

<pallas_src>
import functools

import jax
import jax.numpy as jnp
from jax.experimental import pallas as pl
from jax.experimental.pallas import tpu as pltpu


# ---------------------------------------------------------------------------
# Fast path: fused single-pass kernel.
# ---------------------------------------------------------------------------
def _ca_fused_kernel(x_ref, w1t_ref, w2t_ref, o_ref, *, inv_hw):
    # x_ref/o_ref: (B_TILE, C, HW); w1t_ref: (C, Cr); w2t_ref: (Cr, C).
    # Spatial mean (full HW is in the block, so no masking needed).
    pooled = jnp.sum(x_ref[...].astype(jnp.float32), axis=-1) * inv_hw   # (Bt, C)
    # Tiny channel MLP, batched over B_TILE, on the otherwise-idle MXU.
    y1 = jnp.dot(pooled, w1t_ref[...], preferred_element_type=jnp.float32)
    y1 = y1 * jax.nn.sigmoid(y1)                                         # Swish
    y2 = jnp.dot(y1, w2t_ref[...], preferred_element_type=jnp.float32)
    scale = jax.nn.sigmoid(y2)                                           # (Bt, C) f32
    if o_ref.dtype != jnp.float32:
        scale = scale.astype(o_ref.dtype)
    # Re-read the ref for the epilogue (streamable; keeps live ranges short)
    # and multiply in the input dtype (single pass over the block).
    o_ref[...] = x_ref[...] * scale[:, :, None]


# ---------------------------------------------------------------------------
# Fallback path (per-image block too large for VMEM): two passes.
# ---------------------------------------------------------------------------
def _ca_pool_scale_kernel(x_ref, w1t_ref, w2t_ref, scale_ref, acc_ref, *,
                          inv_hw, hw, hw_tile):
    # x_ref: (1, C, hw_tile); w1t_ref: (C, Cr); w2t_ref: (Cr, C);
    # scale_ref: (1, C, 1); acc_ref: (1, C) VMEM scratch.
    h = pl.program_id(1)

    @pl.when(h == 0)
    def _init():
        acc_ref[...] = jnp.zeros_like(acc_ref)

    x = x_ref[...].astype(jnp.float32)                                   # (1,C,t)
    # Mask the ragged tail of the last tile (OOB lanes read garbage).
    lane = jax.lax.broadcasted_iota(jnp.int32, x.shape, dimension=2)
    x = jnp.where(lane + h * hw_tile < hw, x, 0.0)
    acc_ref[...] += jnp.sum(x, axis=-1)                                  # (1, C)

    @pl.when(h == pl.num_programs(1) - 1)
    def _finalize():
        pooled = acc_ref[...] * inv_hw                                   # (1, C)
        y1 = jnp.dot(pooled, w1t_ref[...], preferred_element_type=jnp.float32)
        y1 = y1 * jax.nn.sigmoid(y1)                                     # (1, Cr)
        y2 = jnp.dot(y1, w2t_ref[...], preferred_element_type=jnp.float32)
        scale_ref[...] = jax.nn.sigmoid(y2)[:, :, None]                  # (1,C,1)


def _ca_apply_scale_kernel(x_ref, scale_ref, o_ref):
    # x_ref/o_ref: (1, C, hw_tile); scale_ref: (1, C, 1). Broadcast over lanes.
    # OOB writes in the ragged last tile are discarded by Pallas.
    s = scale_ref[...]
    if o_ref.dtype != jnp.float32:
        s = s.astype(o_ref.dtype)
    o_ref[...] = x_ref[...] * s


# ---------------------------------------------------------------------------
# Wrapper.
# ---------------------------------------------------------------------------
def _largest_divisor_at_most(n, cap):
    cap = max(1, min(n, cap))
    for d in range(cap, 0, -1):
        if n % d == 0:
            return d
    return 1


def _tpu_generation_defaults():
    """(vmem_budget_bytes, num_tensorcores, target_block_bytes) per chip gen."""
    kind = ""
    try:
        kind = jax.devices()[0].device_kind.lower()
    except Exception:  # pragma: no cover - defensive
        pass
    if "v7" in kind:
        # 64 MiB VMEM per TC, 2 TCs/chip, ~3.2 TB/s HBM.
        return 40 * 1024 * 1024, 2, 6 * 1024 * 1024
    # v5e / v6e: 128 MiB VMEM, single TensorCore.
    return 96 * 1024 * 1024, 1, 8 * 1024 * 1024


def ca_layer(x, w1, w2, *, vmem_budget_bytes=None):
    """Channel attention forward.

    x:  (B, C, H, W)
    w1: (C // r, C)  -- first 1x1 conv weight (out_ch, in_ch), no bias
    w2: (C, C // r)  -- second 1x1 conv weight, no bias
    """
    B, C, H, W = x.shape
    Cr = w1.shape[0]
    HW = H * W
    itemsize = jnp.dtype(x.dtype).itemsize
    inv_hw = 1.0 / float(HW)
    lane = 128

    default_budget, num_tc, target_block_bytes = _tpu_generation_defaults()
    if vmem_budget_bytes is None:
        vmem_budget_bytes = default_budget

    # Input and output blocks are each double-buffered: 4 live blocks at once.
    max_block_bytes = max(vmem_budget_bytes // 4, lane * C * itemsize)
    per_image_bytes = C * HW * itemsize
    weight_bytes = 2 * C * Cr * jnp.dtype(w1.dtype).itemsize

    x_flat = x.reshape(B, C, HW)
    w1t = jnp.transpose(w1)                            # (C, Cr)
    w2t = jnp.transpose(w2)                            # (Cr, C)

    if per_image_bytes <= max_block_bytes:
        # ---------------- fast path: fused, batch-packed blocks ------------
        b_cap = min(max_block_bytes // per_image_bytes,
                    max(1, target_block_bytes // per_image_bytes))
        if num_tc > 1 and B >= num_tc:
            # Keep >= num_tc grid steps so the "parallel" axis shards across
            # the v7x TensorCores. Skipped on single-TC chips (v5e/v6e) where
            # it would only add per-step overhead.
            b_cap = min(b_cap, max(1, B // num_tc))
        b_tile = _largest_divisor_at_most(B, b_cap)

        block_bytes = b_tile * per_image_bytes
        vmem_limit = max(4 * block_bytes + 2 * weight_bytes + (1 << 20),
                         32 * 1024 * 1024)

        out_flat = pl.pallas_call(
            functools.partial(_ca_fused_kernel, inv_hw=inv_hw),
            out_shape=jax.ShapeDtypeStruct((B, C, HW), x.dtype),
            grid_spec=pltpu.PrefetchScalarGridSpec(
                num_scalar_prefetch=0,
                grid=(B // b_tile,),
                in_specs=[
                    # Last two block dims equal the full array dims, so they
                    # are exempt from the (8,128) divisibility rule: no
                    # wrapper-side padding / slicing (and no extra HBM pass).
                    pl.BlockSpec((b_tile, C, HW), lambda b: (b, 0, 0)),
                    pl.BlockSpec((C, Cr), lambda b: (0, 0)),
                    pl.BlockSpec((Cr, C), lambda b: (0, 0)),
                ],
                out_specs=pl.BlockSpec((b_tile, C, HW), lambda b: (b, 0, 0)),
            ),
            compiler_params=pltpu.CompilerParams(
                dimension_semantics=("parallel",),
                vmem_limit_bytes=int(vmem_limit),
            ),
        )(x_flat, w1t, w2t)
    else:
        # ------------- fallback: two-pass, HW-tiled (fits any VMEM) --------
        # Cap block size well below the budget: ~6 MiB already amortizes the
        # per-step overhead while leaving VMEM headroom (esp. v7x's 64 MiB).
        cap_bytes = min(max_block_bytes, 6 * 1024 * 1024)
        hw_tile = max(lane, (cap_bytes // (C * itemsize)) // lane * lane)
        hw_tile = min(hw_tile, ((HW + lane - 1) // lane) * lane)
        n_hw = pl.cdiv(HW, hw_tile)

        block_bytes = C * hw_tile * itemsize
        vmem_limit = max(4 * block_bytes + 2 * weight_bytes + (1 << 20),
                         32 * 1024 * 1024)

        # Pass 1: spatial-sum accumulation (HW axis last, "arbitrary") + MLP.
        scale = pl.pallas_call(
            functools.partial(_ca_pool_scale_kernel, inv_hw=inv_hw,
                              hw=HW, hw_tile=hw_tile),
            out_shape=jax.ShapeDtypeStruct((B, C, 1), jnp.float32),
            grid_spec=pltpu.PrefetchScalarGridSpec(
                num_scalar_prefetch=0,
                grid=(B, n_hw),
                in_specs=[
                    pl.BlockSpec((1, C, hw_tile), lambda b, h: (b, 0, h)),
                    pl.BlockSpec((C, Cr), lambda b, h: (0, 0)),
                    pl.BlockSpec((Cr, C), lambda b, h: (0, 0)),
                ],
                out_specs=pl.BlockSpec((1, C, 1), lambda b, h: (b, 0, 0)),
                scratch_shapes=[pltpu.VMEM((1, C), jnp.float32)],
            ),
            compiler_params=pltpu.CompilerParams(
                dimension_semantics=("parallel", "arbitrary"),
                vmem_limit_bytes=int(vmem_limit),
            ),
        )(x_flat, w1t, w2t)

        # Pass 2: lane-dense elementwise x * scale, fully parallel grid.
        out_flat = pl.pallas_call(
            _ca_apply_scale_kernel,
            out_shape=jax.ShapeDtypeStruct((B, C, HW), x.dtype),
            grid_spec=pltpu.PrefetchScalarGridSpec(
                num_scalar_prefetch=0,
                grid=(B, n_hw),
                in_specs=[
                    pl.BlockSpec((1, C, hw_tile), lambda b, h: (b, 0, h)),
                    pl.BlockSpec((1, C, 1), lambda b, h: (b, 0, 0)),
                ],
                out_specs=pl.BlockSpec((1, C, hw_tile), lambda b, h: (b, 0, h)),
            ),
            compiler_params=pltpu.CompilerParams(
                dimension_semantics=("parallel", "parallel"),
                vmem_limit_bytes=int(vmem_limit),
            ),
        )(x_flat, scale)

    return out_flat.reshape(B, C, H, W)


def ca_layer_ref(x, w1, w2):
    """Pure-JAX reference of the PyTorch forward pass."""
    pooled = jnp.mean(x, axis=(2, 3), keepdims=True)                  # (B,C,1,1)
    y1 = jnp.einsum("rc,bcij->brij", w1, pooled)                      # (B,Cr,1,1)
    y1 = y1 * jax.nn.sigmoid(y1)
    y2 = jnp.einsum("cr,brij->bcij", w2, y1)                          # (B,C,1,1)
    return x * jax.nn.sigmoid(y2)


if __name__ == "__main__":
    key = jax.random.PRNGKey(0)
    reduction = 8

    # --- shape 1: nicely aligned -------------------------------------------
    B, C, H, W = 2, 16, 16, 16
    Cr = C // reduction
    kx, k1, k2, kx2 = jax.random.split(key, 4)
    x = jax.random.normal(kx, (B, C, H, W), dtype=jnp.float32)
    # nn.Conv2d(out_ch, in_ch, 1, bias=False) weights squeezed to (out_ch, in_ch).
    w1 = jax.random.normal(k1, (Cr, C), dtype=jnp.float32) * 0.1
    w2 = jax.random.normal(k2, (C, Cr), dtype=jnp.float32) * 0.1

    ref = ca_layer_ref(x, w1, w2)
    out = jax.block_until_ready(ca_layer(x, w1, w2))
    assert out.shape == (B, C, H, W)
    assert jnp.allclose(out, ref, atol=1e-5, rtol=1e-5)

    # Two-pass fallback (forced via a tiny VMEM budget so it is exercised at
    # these small shapes; in production it triggers for very large images).
    out_fb = jax.block_until_ready(
        ca_layer(x, w1, w2, vmem_budget_bytes=32 * 1024))
    assert jnp.allclose(out_fb, ref, atol=1e-5, rtol=1e-5)

    # --- shape 2: ragged HW (not a multiple of 128) -------------------------
    H2, W2 = 15, 9
    x2 = jax.random.normal(kx2, (B, C, H2, W2), dtype=jnp.float32)
    ref2 = ca_layer_ref(x2, w1, w2)
    out2 = jax.block_until_ready(ca_layer(x2, w1, w2))
    assert jnp.allclose(out2, ref2, atol=1e-5, rtol=1e-5)
    out2_fb = jax.block_until_ready(
        ca_layer(x2, w1, w2, vmem_budget_bytes=16 * 1024))
    assert jnp.allclose(out2_fb, ref2, atol=1e-5, rtol=1e-5)

    print("KERNEL_OK")
</pallas_src>

<mosaic_0001>
module attributes {stable_mosaic.version = 11 : i64} {
  func.func @_ca_fused_kernel(%arg0: i32, %arg1: memref<2x16x256xf32, #tpu.memory_space<vmem>>, %arg2: memref<16x2xf32, #tpu.memory_space<vmem>>, %arg3: memref<2x16xf32, #tpu.memory_space<vmem>>, %arg4: memref<2x16x256xf32, #tpu.memory_space<vmem>>) attributes {dimension_semantics = [#tpu.dimension_semantics<parallel>], iteration_bounds = array<i64: 1>, scalar_prefetch = 0 : i64, scratch_operands = 0 : i64, tpu.core_type = #tpu.core_type<tc>, window_params = [{transform_indices = @transform_0, window_bounds = array<i64: 2, 16, 256>}, {pipeline_mode = #tpu.pipeline_mode<synchronous>, transform_indices = @transform_1, window_bounds = array<i64: 16, 2>}, {pipeline_mode = #tpu.pipeline_mode<synchronous>, transform_indices = @transform_2, window_bounds = array<i64: 2, 16>}, {transform_indices = @transform_3, window_bounds = array<i64: 2, 16, 256>}]} {
    %c0 = arith.constant 0 : index
    %c0_0 = arith.constant 0 : index
    %c0_1 = arith.constant 0 : index
    %0 = vector.load %arg1[%c0, %c0_0, %c0_1] : memref<2x16x256xf32, #tpu.memory_space<vmem>>, vector<2x16x256xf32>
    %cst = arith.constant dense<0.000000e+00> : vector<2x16xf32>
    %1 = vector.multi_reduction <add>, %0, %cst [2] : vector<2x16x256xf32> to vector<2x16xf32>
    %cst_2 = arith.constant 3.906250e-03 : f32
    %2 = vector.broadcast %cst_2 : f32 to vector<2x16xf32>
    %3 = arith.mulf %1, %2 : vector<2x16xf32>
    %c0_3 = arith.constant 0 : index
    %c0_4 = arith.constant 0 : index
    %4 = vector.load %arg2[%c0_3, %c0_4] : memref<16x2xf32, #tpu.memory_space<vmem>>, vector<16x2xf32>
    %cst_5 = arith.constant dense<0.000000e+00> : vector<2x2xf32>
    %5 = tpu.matmul %3, %4, %cst_5 {dimension_numbers = #tpu.dot_dimension_numbers<[1], [0], [0], [1], [0, 0, 1, 1], [], []>} : vector<2x16xf32>, vector<16x2xf32>, vector<2x2xf32> -> vector<2x2xf32>
    %6 = arith.negf %5 : vector<2x2xf32>
    %7 = math.exp %6 : vector<2x2xf32>
    %cst_6 = arith.constant 1.000000e+00 : f32
    %8 = vector.broadcast %cst_6 : f32 to vector<2x2xf32>
    %9 = arith.addf %8, %7 : vector<2x2xf32>
    %10 = arith.divf %8, %9 : vector<2x2xf32>
    %11 = arith.mulf %5, %10 : vector<2x2xf32>
    %c0_7 = arith.constant 0 : index
    %c0_8 = arith.constant 0 : index
    %12 = vector.load %arg3[%c0_7, %c0_8] : memref<2x16xf32, #tpu.memory_space<vmem>>, vector<2x16xf32>
    %cst_9 = arith.constant dense<0.000000e+00> : vector<2x16xf32>
    %13 = tpu.matmul %11, %12, %cst_9 {dimension_numbers = #tpu.dot_dimension_numbers<[1], [0], [0], [1], [0, 0, 1, 1], [], []>} : vector<2x2xf32>, vector<2x16xf32>, vector<2x16xf32> -> vector<2x16xf32>
    %14 = arith.negf %13 : vector<2x16xf32>
    %15 = math.exp %14 : vector<2x16xf32>
    %cst_10 = arith.constant 1.000000e+00 : f32
    %16 = vector.broadcast %cst_10 : f32 to vector<2x16xf32>
    %17 = arith.addf %16, %15 : vector<2x16xf32>
    %18 = arith.divf %16, %17 : vector<2x16xf32>
    %c0_11 = arith.constant 0 : index
    %c0_12 = arith.constant 0 : index
    %c0_13 = arith.constant 0 : index
    %19 = vector.load %arg1[%c0_11, %c0_12, %c0_13] : memref<2x16x256xf32, #tpu.memory_space<vmem>>, vector<2x16x256xf32>
    %20 = vector.shape_cast %18 : vector<2x16xf32> to vector<2x16x1xf32>
    %21 = vector.broadcast %20 : vector<2x16x1xf32> to vector<2x16x256xf32>
    %22 = arith.mulf %19, %21 : vector<2x16x256xf32>
    %c0_14 = arith.constant 0 : index
    %c0_15 = arith.constant 0 : index
    %c0_16 = arith.constant 0 : index
    %23 = vector.load %arg4[%c0_14, %c0_15, %c0_16] : memref<2x16x256xf32, #tpu.memory_space<vmem>>, vector<2x16x256xf32>
    tpu.vector_store %arg4[%c0_14, %c0_15, %c0_16], %22 {strides = array<i32>} : memref<2x16x256xf32, #tpu.memory_space<vmem>>, vector<2x16x256xf32>,
    return
  }
  func.func @transform_0(%arg0: i32) -> (i32, i32, i32) {
    %c0_i32 = arith.constant 0 : i32
    %c0_i32_0 = arith.constant 0 : i32
    %c0_i32_1 = arith.constant 0 : i32
    return %arg0, %c0_i32, %c0_i32_0 : i32, i32, i32
  }
  func.func @transform_1(%arg0: i32) -> (i32, i32) {
    %c0_i32 = arith.constant 0 : i32
    %c0_i32_0 = arith.constant 0 : i32
    %c0_i32_1 = arith.constant 0 : i32
    return %c0_i32, %c0_i32_0 : i32, i32
  }
  func.func @transform_2(%arg0: i32) -> (i32, i32) {
    %c0_i32 = arith.constant 0 : i32
    %c0_i32_0 = arith.constant 0 : i32
    %c0_i32_1 = arith.constant 0 : i32
    return %c0_i32, %c0_i32_0 : i32, i32
  }
  func.func @transform_3(%arg0: i32) -> (i32, i32, i32) {
    %c0_i32 = arith.constant 0 : i32
    %c0_i32_0 = arith.constant 0 : i32
    %c0_i32_1 = arith.constant 0 : i32
    return %arg0, %c0_i32, %c0_i32_0 : i32, i32, i32
  }
}

</mosaic_0001>

<llo_original>
// kernel: tpu_custom_call.1
$region0: #{tpu_custom_call.1}
  #allocation0 [shape = 'u32[]', space=smem, size = 0x4, offset = 0x4, fixed_abs, tag = 'smem constant byte address 0x4 - core index']
  #allocation1 [shape = 'u32[144,128]{1,0:T(1,128)}', space=vmem, size = 0x12000, scoped, tag = 'internal scratch']
  %s0 = inlined_call_operand.hbm [shape: f32[2,16,256], index: 0, kind: input, shape index: {}]
  %s1 = inlined_call_operand.vmem [shape: f32[16,2], index: 1, kind: input, shape index: {}]
  %s2 = inlined_call_operand.vmem [shape: f32[2,16], index: 2, kind: input, shape index: {}]
  %s3 = inlined_call_operand.hbm [shape: f32[2,16,256], index: 3, kind: output, shape index: {}]
  %s4 = sld [smem:[#allocation0]]
  $region26: #{tpu_custom_call.1} parent=0
    _
  %s6 = ssub.s32 1, %s4
  %s7 = scalar_select 0, %s6, %s4
  $region1: #{tpu_custom_call.1} parent=0
    #allocation2 [shape = 'u8[32768]{0}', space=vmem, size = 0x8000, scoped, tag = 'input window, operand 0, single buffered']
    #allocation3 [shape = 's32[1]{0}', space=sflag, size = 0x4, scoped, tag = 'scoped memory for tpu_custom_call.1']
    #allocation4 [shape = 's32[1]{0}', space=sflag, size = 0x4, scoped, tag = 'scoped memory for tpu_custom_call.1']
    #allocation5 [shape = 'u8[32768]{0}', space=vmem, size = 0x8000, scoped, tag = 'output window, operand 0, single buffered']
    %8 = vsyncpa [#allocation3], 0
    %9 = vsyncpa [#allocation4], 0
    // Predicated region
    $region2: #{tpu_custom_call.1} parent=1 // pred_check
      _
    $region3: #{tpu_custom_call.1} parent=1 // pred_check_branch
      %11 = sbr.rel (0) target = $region5
    $region4: #{tpu_custom_call.1} parent=1 // pred_region
      %s13 = ssub.s32 1024, 1024
      %14 = vsyncadd [#allocation3], %s13
      %s15 = sshll.u32 [#allocation2], 4
      %s16 = int_to_ptr.vmem [resolvable:$true] %s15
      %21 = dma.hbm_to_vmem [thread:$0]  %s0, 1024, %s16, [#allocation3], 256, 256, 16
    $region5: #{tpu_custom_call.1} parent=1 // pred_fallthru
      _
    // Predicated region
    $region6: #{tpu_custom_call.1} parent=1 // pred_check
      _
    $region7: #{tpu_custom_call.1} parent=1 // pred_check_branch
      %23 = sbr.rel (0) target = $region9
    $region8: #{tpu_custom_call.1} parent=1 // pred_region
      _
    $region9: #{tpu_custom_call.1} parent=1 // pred_fallthru
      _
    // Predicated region
    $region10: #{tpu_custom_call.1} parent=1 // pred_check
      _
    $region11: #{tpu_custom_call.1} parent=1 // pred_check_branch
      %25 = sbr.rel (0) target = $region13
    $region12: #{tpu_custom_call.1} parent=1 // pred_region
      _
    $region13: #{tpu_custom_call.1} parent=1 // pred_fallthru
      _
    // Predicated region
    $region14: #{tpu_custom_call.1} parent=1 // pred_check
      _
    $region15: #{tpu_custom_call.1} parent=1 // pred_check_branch
      %27 = sbr.rel (0) target = $region17
    $region16: #{tpu_custom_call.1} parent=1 // pred_region
      %28 = dma.done [#allocation3], 1024
    $region17: #{tpu_custom_call.1} parent=1 // pred_fallthru
      _
    %v29 = vld [vmem:[#allocation2] sm:$0xff]
    %v30 = vld [vmem:[#allocation2 + $0x8] sm:$0xff]
    %v31 = vld [vmem:[#allocation2 + $0x10] sm:$0xff]
    %v32 = vld [vmem:[#allocation2 + $0x18] sm:$0xff]
    %v33 = vld [vmem:[#allocation2 + $0x20] sm:$0xff]
    %v34 = vld [vmem:[#allocation2 + $0x28] sm:$0xff]
    %v35 = vld [vmem:[#allocation2 + $0x30] sm:$0xff]
    %v36 = vld [vmem:[#allocation2 + $0x38] sm:$0xff]
    %v37 = vadd.f32 %v29, %v30
    %38 = vadd.xlane.f32.xlu0 %v37
    %v39 = vpop.xlane.xlu0 %38
    %v40 = vadd.f32 %v31, %v32
    %41 = vadd.xlane.f32.xlu0 %v40
    %v42 = vpop.xlane.xlu0 %41
    %v43 = vadd.f32 %v33, %v34
    %44 = vadd.xlane.f32.xlu0 %v43
    %v45 = vpop.xlane.xlu0 %44
    %v46 = vadd.f32 %v35, %v36
    %47 = vadd.xlane.f32.xlu0 %v46
    %v48 = vpop.xlane.xlu0 %47
    %v49 = vmul.f32 %v39, 0.00390625
    %v50 = vmul.f32 %v42, 0.00390625
    %v51 = vmul.f32 %v45, 0.00390625
    %v52 = vmul.f32 %v48, 0.00390625
    %v53 = vld [vmem:[%s1] sm:$0xff]
    %v54 = vld [vmem:[%s1 + $0x8] sm:$0xff]
    %v59 = vlaneseq
    %v60 = vand.u32 %v59, 127
    %v61 = vlaneseq
    %v62 = vshrl.u32 %v61, 7
    %v63 = vsub.s32 %v60, %v62
    %v64 = vrot.slane %v49, %v63
    %v65 = vadd.s32 %v60, 4294967288
    %v66 = vlaneseq
    %v67 = vshrl.u32 %v66, 7
    %v68 = vsub.s32 %v65, %v67
    %v69 = vrot.slane %v50, %v68
    %vm70 = vcmask 130112
    %v71 = vsel %vm70, %v69, %v64
    %v72 = vlaneseq
    %v73 = vshrl.u32 %v72, 7
    %v74 = vsub.s32 %v60, %v73
    %v75 = vrot.slane %v51, %v74
    %v76 = vlaneseq
    %v77 = vshrl.u32 %v76, 7
    %v78 = vsub.s32 %v65, %v77
    %v79 = vrot.slane %v52, %v78
    %v80 = vsel %vm70, %v79, %v75
    %vm81 = vcmask 1041409
    %v82 = vsel %vm81, %v80, %v71
    %vm83 = vcmask 130048
    %v84 = vsel %vm83, %v82, 0
    %86 = vmatprep.subr.mxu0 0.0
    %87 = vmatpush1.msra.mxu0 %v53
    %88 = vmatprep.subr.mxu0 0.0
    %89 = vmatpush1.msra.mxu0 %v54
    %90 = vmatprep.subr.mxu0 0.0
    %91 = vmatpush1.msra.mxu0 0.0
    %92 = vmatprep.subr.mxu0 0.0
    %93 = vmatpush1.msra.mxu0 0.0
    %94 = vmatprep.subr.mxu0 0.0
    %95 = vmatpush1.msra.mxu0 0.0
    %96 = vmatprep.subr.mxu0 0.0
    %97 = vmatpush1.msra.mxu0 0.0
    %98 = vmatprep.subr.mxu0 0.0
    %99 = vmatpush1.msra.mxu0 0.0
    %100 = vmatprep.subr.mxu0 0.0
    %101 = vmatpush1.msra.mxu0 0.0
    %102 = vmatprep.subr.mxu0 0.0
    %103 = vmatpush1.msra.mxu0 0.0
    %104 = vmatprep.subr.mxu0 0.0
    %105 = vmatpush1.msra.mxu0 0.0
    %106 = vmatprep.subr.mxu0 0.0
    %107 = vmatpush1.msra.mxu0 0.0
    %108 = vmatprep.subr.mxu0 0.0
    %109 = vmatpush1.msra.mxu0 0.0
    %110 = vmatprep.subr.mxu0 0.0
    %111 = vmatpush1.msra.mxu0 0.0
    %112 = vmatprep.subr.mxu0 0.0
    %113 = vmatpush1.msra.mxu0 0.0
    %114 = vmatprep.subr.mxu0 0.0
    %115 = vmatpush1.msra.mxu0 0.0
    %116 = vmatprep.subr.mxu0 0.0
    %117 = vmatpush1.msra.mxu0 0.0
    %118 = vmatprep.subr.mxu0 0.0
    %119 = vmatpush1.msra.mxu0 0.0
    %120 = vmatprep.subr.mxu0 0.0
    %121 = vmatpush1.msra.mxu0 0.0
    %122 = vmatprep.subr.mxu0 0.0
    %123 = vmatpush1.msra.mxu0 0.0
    %124 = vmatprep.subr.mxu0 0.0
    %125 = vmatpush1.msra.mxu0 0.0
    %126 = vmatprep.subr.mxu0 0.0
    %127 = vmatpush1.msra.mxu0 0.0
    %128 = vmatprep.subr.mxu0 0.0
    %129 = vmatpush1.msra.mxu0 0.0
    %130 = vmatprep.subr.mxu0 0.0
    %131 = vmatpush1.msra.mxu0 0.0
    %132 = vmatprep.subr.mxu0 0.0
    %133 = vmatpush1.msra.mxu0 0.0
    %134 = vmatprep.subr.mxu0 0.0
    %135 = vmatpush1.msra.mxu0 0.0
    %136 = vmatprep.subr.mxu0 0.0
    %137 = vmatpush1.msra.mxu0 0.0
    %138 = vmatprep.subr.mxu0 0.0
    %139 = vmatpush1.msra.mxu0 0.0
    %140 = vmatprep.subr.mxu0 0.0
    %141 = vmatpush1.msra.mxu0 0.0
    %142 = vmatprep.subr.mxu0 0.0
    %143 = vmatpush1.msra.mxu0 0.0
    %144 = vmatprep.subr.mxu0 0.0
    %145 = vmatpush1.msra.mxu0 0.0
    %146 = vmatprep.subr.mxu0 0.0
    %147 = vmatpush1.msra.mxu0 0.0
    %148 = vmatprep.subr.mxu0 0.0
    %149 = vmatpush1.msra.mxu0 0.0
    %150 = vmatprep.mubr.f32.mxu0 0.0
    %151 = vmatmul.mubr.f32.gmra.mrb[0].mxu0 %v84
    %v152 = vpop.f32.mrb[0].mxu0
    %v153 = vadd.f32 0.0, %v152
    %v154 = vpop.f32.mrb[0].mxu0
    %155 = vdwg.mxu0
    %v156 = vxor.u32 %v153, 2147483648
    %v157 = vmul.f32 %v156, 1.442695
    %v158 = vpow.pop %v157
    %v159 = vadd.f32 %v158, 1.0
    %v160 = vrcp.pop %v159
    %v161 = vmul.f32 1.0, %v160
    %v162 = vmul.f32 %v153, %v161
    %v163 = vld [vmem:[%s2] sm:$0x3]
    %vm164 = vcmask 15360
    %v166 = vsel %vm164, %v162, 0
    %vm168 = vcmask 1041408
    %v170 = vsel %vm168, %v163, 0
    %172 = vmatprep.subr.mxu0 0.0
    %173 = vmatpush1.msra.mxu0 %v170
    %174 = vmatprep.subr.mxu0 0.0
    %175 = vmatpush1.msra.mxu0 0.0
    %176 = vmatprep.subr.mxu0 0.0
    %177 = vmatpush1.msra.mxu0 0.0
    %178 = vmatprep.subr.mxu0 0.0
    %179 = vmatpush1.msra.mxu0 0.0
    %180 = vmatprep.subr.mxu0 0.0
    %181 = vmatpush1.msra.mxu0 0.0
    %182 = vmatprep.subr.mxu0 0.0
    %183 = vmatpush1.msra.mxu0 0.0
    %184 = vmatprep.subr.mxu0 0.0
    %185 = vmatpush1.msra.mxu0 0.0
    %186 = vmatprep.subr.mxu0 0.0
    %187 = vmatpush1.msra.mxu0 0.0
    %188 = vmatprep.subr.mxu0 0.0
    %189 = vmatpush1.msra.mxu0 0.0
    %190 = vmatprep.subr.mxu0 0.0
    %191 = vmatpush1.msra.mxu0 0.0
    %192 = vmatprep.subr.mxu0 0.0
    %193 = vmatpush1.msra.mxu0 0.0
    %194 = vmatprep.subr.mxu0 0.0
    %195 = vmatpush1.msra.mxu0 0.0
    %196 = vmatprep.subr.mxu0 0.0
    %197 = vmatpush1.msra.mxu0 0.0
    %198 = vmatprep.subr.mxu0 0.0
    %199 = vmatpush1.msra.mxu0 0.0
    %200 = vmatprep.subr.mxu0 0.0
    %201 = vmatpush1.msra.mxu0 0.0
    %202 = vmatprep.subr.mxu0 0.0
    %203 = vmatpush1.msra.mxu0 0.0
    %204 = vmatprep.subr.mxu0 0.0
    %205 = vmatpush1.msra.mxu0 0.0
    %206 = vmatprep.subr.mxu0 0.0
    %207 = vmatpush1.msra.mxu0 0.0
    %208 = vmatprep.subr.mxu0 0.0
    %209 = vmatpush1.msra.mxu0 0.0
    %210 = vmatprep.subr.mxu0 0.0
    %211 = vmatpush1.msra.mxu0 0.0
    %212 = vmatprep.subr.mxu0 0.0
    %213 = vmatpush1.msra.mxu0 0.0
    %214 = vmatprep.subr.mxu0 0.0
    %215 = vmatpush1.msra.mxu0 0.0
    %216 = vmatprep.subr.mxu0 0.0
    %217 = vmatpush1.msra.mxu0 0.0
    %218 = vmatprep.subr.mxu0 0.0
    %219 = vmatpush1.msra.mxu0 0.0
    %220 = vmatprep.subr.mxu0 0.0
    %221 = vmatpush1.msra.mxu0 0.0
    %222 = vmatprep.subr.mxu0 0.0
    %223 = vmatpush1.msra.mxu0 0.0
    %224 = vmatprep.subr.mxu0 0.0
    %225 = vmatpush1.msra.mxu0 0.0
    %226 = vmatprep.subr.mxu0 0.0
    %227 = vmatpush1.msra.mxu0 0.0
    %228 = vmatprep.subr.mxu0 0.0
    %229 = vmatpush1.msra.mxu0 0.0
    %230 = vmatprep.subr.mxu0 0.0
    %231 = vmatpush1.msra.mxu0 0.0
    %232 = vmatprep.subr.mxu0 0.0
    %233 = vmatpush1.msra.mxu0 0.0
    %234 = vmatprep.subr.mxu0 0.0
    %235 = vmatpush1.msra.mxu0 0.0
    %236 = vmatprep.mubr.f32.mxu0 0.0
    %237 = vmatmul.mubr.f32.gmra.mrb[0].mxu0 %v166
    %v238 = vpop.f32.mrb[0].mxu0
    %v239 = vadd.f32 0.0, %v238
    %v240 = vpop.f32.mrb[0].mxu0
    %241 = vdwg.mxu0
    %v242 = vxor.u32 %v239, 2147483648
    %v243 = vmul.f32 %v242, 1.442695
    %v244 = vpow.pop %v243
    %v245 = vadd.f32 %v244, 1.0
    %v246 = vrcp.pop %v245
    %v247 = vmul.f32 1.0, %v246
    %v248 = vlaneseq
    %v249 = vshrl.u32 %v248, 7
    %v250 = vsub.s32 0, %v249
    %v251 = vrot.slane %v247, %v250
    %253 = vbcast.lane.b32.xlu0 %v251, 256
    %v254 = vpop.permute.xlu0 %253
    %s256 = sor.u32 256, 8
    %257 = vbcast.lane.b32.xlu0 %v251, %s256
    %v258 = vpop.permute.xlu0 %257
    %v259 = vlaneseq
    %v260 = vshrl.u32 %v259, 7
    %v261 = vsub.s32 1, %v260
    %v262 = vrot.slane %v247, %v261
    %264 = vbcast.lane.b32.xlu0 %v262, 256
    %v265 = vpop.permute.xlu0 %264
    %s267 = sor.u32 256, 8
    %268 = vbcast.lane.b32.xlu0 %v262, %s267
    %v269 = vpop.permute.xlu0 %268
    %v270 = vmul.f32 %v29, %v254
    %v271 = vmul.f32 %v30, %v254
    %v272 = vmul.f32 %v31, %v258
    %v273 = vmul.f32 %v32, %v258
    %v274 = vmul.f32 %v33, %v265
    %v275 = vmul.f32 %v34, %v265
    %v276 = vmul.f32 %v35, %v269
    %v277 = vmul.f32 %v36, %v269
    %278 = vst [vmem:[#allocation5] sm:$0xff] %v270
    %279 = vst [vmem:[#allocation5 + $0x8] sm:$0xff] %v271
    %280 = vst [vmem:[#allocation5 + $0x10] sm:$0xff] %v272
    %281 = vst [vmem:[#allocation5 + $0x18] sm:$0xff] %v273
    %282 = vst [vmem:[#allocation5 + $0x20] sm:$0xff] %v274
    %283 = vst [vmem:[#allocation5 + $0x28] sm:$0xff] %v275
    %284 = vst [vmem:[#allocation5 + $0x30] sm:$0xff] %v276
    %285 = vst [vmem:[#allocation5 + $0x38] sm:$0xff] %v277
    // Predicated region
    $region18: #{tpu_custom_call.1} parent=1 // pred_check
      _
    $region19: #{tpu_custom_call.1} parent=1 // pred_check_branch
      %287 = sbr.rel (0) target = $region21
    $region20: #{tpu_custom_call.1} parent=1 // pred_region
      %s289 = ssub.s32 1024, 1024
      %290 = vsyncadd [#allocation4], %s289
      %s291 = sshll.u32 [#allocation5], 4
      %s292 = int_to_ptr.vmem [resolvable:$true] %s291
      %297 = dma.vmem_to_hbm [thread:$0]  %s292, 1024, %s3, [#allocation4], 256, 256, 16
    $region21: #{tpu_custom_call.1} parent=1 // pred_fallthru
      _
    // Predicated region
    $region22: #{tpu_custom_call.1} parent=1 // pred_check
      _
    $region23: #{tpu_custom_call.1} parent=1 // pred_check_branch
      %299 = sbr.rel (0) target = $region25
    $region24: #{tpu_custom_call.1} parent=1 // pred_region
      %300 = dma.done [#allocation4], 1024
    $region25: #{tpu_custom_call.1} parent=1 // pred_fallthru
      _
    %301 = vsyncpa [#allocation3], 1
    %302 = vsyncpa [#allocation4], 1

</llo_original>
